<compile_context>
chip_gen: v6e
topology: v6e:2x2x1
jax: 0.10.0
libtpu: 0.0.40
codegen_flags: <defaults>
</compile_context>

<pallas_src>
import functools
import math

import jax
import jax.numpy as jnp
from jax.experimental import pallas as pl
from jax.experimental.pallas import tpu as pltpu


# ---------------------------------------------------------------------------
# Generation-aware VMEM budgets.
# ---------------------------------------------------------------------------
def _vmem_params():
    """Returns (vmem_limit_bytes, per_step_budget_bytes).

    per_step_budget caps the *double-buffered* working set of one grid step.
    v7x has only 64 MiB VMEM per TensorCore -> stay well below it; v5e/v6e
    have 128 MiB -> wider tiles get the store stream to ~85%+ of roofline.
    """
    cap = None
    try:
        cap = getattr(pltpu.get_tpu_info(), "vmem_capacity_bytes", None)
    except Exception:  # no TPU info available at trace time -> be conservative
        cap = None
    if cap is not None and cap > 80 * 1024 * 1024:       # v5e / v6e (128 MiB)
        return 64 * 1024 * 1024, 32 * 1024 * 1024
    return 48 * 1024 * 1024, 20 * 1024 * 1024            # v7x (64 MiB) / unknown


# ---------------------------------------------------------------------------
# Small-N path: one grid step handles bt whole batches at full (N, N).
# ---------------------------------------------------------------------------
def _batched_kernel(x_ref, o_ref, *, scale):
    x = x_ref[...]                                        # (bt, N, C)
    s = jnp.einsum("bnc,bmc->bnm", x, x,
                   preferred_element_type=jnp.float32)    # MXU, transpose folded
    o_ref[...] = (s * scale).astype(o_ref.dtype)


def _batched_kernel_his(x_ref, his_ref, o_ref, *, scale):
    x = x_ref[...]
    s = jnp.einsum("bnc,bmc->bnm", x, x,
                   preferred_element_type=jnp.float32)
    s = s * scale + his_ref[...].astype(jnp.float32)
    o_ref[...] = s.astype(o_ref.dtype)


# ---------------------------------------------------------------------------
# Large-N path: lane-dense (tm, tn) output tiles; x passed twice (row / col
# tile), transpose folded into the contraction.
# ---------------------------------------------------------------------------
def _tiled_kernel(xr_ref, xc_ref, o_ref, *, scale):
    s = jax.lax.dot_general(xr_ref[0], xc_ref[0], (((1,), (1,)), ((), ())),
                            preferred_element_type=jnp.float32)   # (tm, tn)
    o_ref[0] = (s * scale).astype(o_ref.dtype)


def _tiled_kernel_his(xr_ref, xc_ref, his_ref, o_ref, *, scale):
    s = jax.lax.dot_general(xr_ref[0], xc_ref[0], (((1,), (1,)), ((), ())),
                            preferred_element_type=jnp.float32)
    s = s * scale + his_ref[0].astype(jnp.float32)
    o_ref[0] = s.astype(o_ref.dtype)


def _choose_large_tiles(N, C, itemx, itemout, itemhis, has_his, budget):
    """Pick (tm, tn): prefer tn == N (full, contiguous output rows) with the
    largest tm that fits, otherwise the largest lane-dense multiple of 128."""
    half = budget // 2                       # Pallas double-buffers each array
    out_item = itemout + (itemhis if has_his else 0)

    def tn_max_for(tm):
        fixed = tm * C * itemx               # xr row tile
        per_col = C * itemx + tm * out_item  # xc + score (+ his) per column
        return (half - fixed) // per_col if half > fixed else 0

    for tm in (512, 256, 128):               # full-row output first
        if tm > N:
            continue
        if tn_max_for(tm) >= N:
            return tm, N
    for tm in (256, 128):                    # lane-dense partial rows
        if tm > N:
            continue
        tn = min(N, (tn_max_for(tm) // 128) * 128)
        if tn >= 128:
            return tm, tn
    return 128, 128                          # last resort (never hit with sane budgets)


def spatial_attention(x, score_his=None, dropout=0.0, *, step_budget_bytes=None):
    """Pallas-backed Spatial_Attention_layer.forward.

    x:         (B, N, C)
    score_his: optional (B, N, N)
    returns:   (score, score_his_out) matching the PyTorch module.
    step_budget_bytes: optional override of the per-step VMEM budget (testing/tuning).
    """
    if dropout != 0.0:
        # TODO(synk): non-zero dropout would need pltpu.prng_random_bits masking.
        raise NotImplementedError("only dropout=0.0 (the module default) is supported")

    B, N, C = x.shape
    scale = 1.0 / math.sqrt(C)
    has_his = score_his is not None
    out_dtype = x.dtype if not has_his else jnp.result_type(x.dtype, score_his.dtype)
    out_shape = jax.ShapeDtypeStruct((B, N, N), out_dtype)

    # ---- Tiny / lane-sparse problems: plain XLA is strictly faster than any
    # Pallas configuration (launch + per-step overhead dominates, and an
    # output lane dim < 128 wastes the vst path).
    if N < 128:
        score = jnp.einsum("bnc,bmc->bnm", x, x) * scale
        if has_his:
            score = score + score_his
        score = score.astype(out_dtype)
        return score, (score if has_his else None)

    vmem_limit, budget = _vmem_params()
    if step_budget_bytes is not None:
        budget = int(step_budget_bytes)

    itemx = jnp.dtype(x.dtype).itemsize
    itemout = jnp.dtype(out_dtype).itemsize
    itemhis = jnp.dtype(score_his.dtype).itemsize if has_his else 0
    flops = int(2 * B * N * N * C)

    per_batch = N * C * itemx + N * N * itemout + (N * N * itemhis if has_his else 0)

    if 2 * per_batch <= budget:
        # ---- Small-N path: whole (N, N) score per batch; pack bt batches per
        # grid step so each step moves a wide DMA and the ~0.35us/step
        # overhead is amortized, while staying inside the generation budget.
        bt = int(max(1, min(B, budget // (2 * per_batch))))
        grid = (pl.cdiv(B, bt),)
        x_spec = pl.BlockSpec((bt, N, C), lambda b: (b, 0, 0))
        s_spec = pl.BlockSpec((bt, N, N), lambda b: (b, 0, 0))
        cparams = pltpu.CompilerParams(
            dimension_semantics=("parallel",),
            vmem_limit_bytes=vmem_limit,
        )
        cost = pl.CostEstimate(flops=flops, transcendentals=0,
                               bytes_accessed=int(B * per_batch))
        if not has_his:
            score = pl.pallas_call(
                functools.partial(_batched_kernel, scale=scale),
                out_shape=out_shape,
                grid_spec=pltpu.PrefetchScalarGridSpec(
                    num_scalar_prefetch=0, grid=grid,
                    in_specs=[x_spec], out_specs=s_spec),
                compiler_params=cparams,
                cost_estimate=cost,
            )(x)
        else:
            score = pl.pallas_call(
                functools.partial(_batched_kernel_his, scale=scale),
                out_shape=out_shape,
                grid_spec=pltpu.PrefetchScalarGridSpec(
                    num_scalar_prefetch=0, grid=grid,
                    in_specs=[x_spec, s_spec], out_specs=s_spec),
                compiler_params=cparams,
                cost_estimate=cost,
            )(x, score_his)
    else:
        # ---- Large-N path: wide, lane-dense output tiles (tn = N when it
        # fits), fully parallel grid.  With tn = N the j axis has extent 1, so
        # megacore sharding (v7x) lands on B / i and the xr row tile stays
        # resident across the whole row of output.
        tm, tn = _choose_large_tiles(N, C, itemx, itemout, itemhis, has_his, budget)
        gi, gj = pl.cdiv(N, tm), pl.cdiv(N, tn)
        grid = (B, gi, gj)
        xr_spec = pl.BlockSpec((1, tm, C), lambda b, i, j: (b, i, 0))
        xc_spec = pl.BlockSpec((1, tn, C), lambda b, i, j: (b, j, 0))
        s_spec = pl.BlockSpec((1, tm, tn), lambda b, i, j: (b, i, j))
        cparams = pltpu.CompilerParams(
            dimension_semantics=("parallel", "parallel", "parallel"),
            vmem_limit_bytes=vmem_limit,
        )
        bytes_accessed = int(
            B * gi * tm * C * itemx          # row tiles (fetched once per (b, i))
            + B * gi * gj * tn * C * itemx   # col tiles (refetched per j)
            + B * N * N * itemout
            + (B * N * N * itemhis if has_his else 0))
        cost = pl.CostEstimate(flops=flops, transcendentals=0,
                               bytes_accessed=bytes_accessed)
        if not has_his:
            score = pl.pallas_call(
                functools.partial(_tiled_kernel, scale=scale),
                out_shape=out_shape,
                grid_spec=pltpu.PrefetchScalarGridSpec(
                    num_scalar_prefetch=0, grid=grid,
                    in_specs=[xr_spec, xc_spec], out_specs=s_spec),
                compiler_params=cparams,
                cost_estimate=cost,
            )(x, x)
        else:
            score = pl.pallas_call(
                functools.partial(_tiled_kernel_his, scale=scale),
                out_shape=out_shape,
                grid_spec=pltpu.PrefetchScalarGridSpec(
                    num_scalar_prefetch=0, grid=grid,
                    in_specs=[xr_spec, xc_spec, s_spec], out_specs=s_spec),
                compiler_params=cparams,
                cost_estimate=cost,
            )(x, x, score_his)

    return score, (score if has_his else None)


def _ref(x, his=None):
    s = jnp.einsum("bnc,bmc->bnm", x, x) / math.sqrt(x.shape[-1])
    return s if his is None else s + his


if __name__ == "__main__":
    key = jax.random.PRNGKey(0)
    k1, k2, k3, k4, k5, k6 = jax.random.split(key, 6)

    # 1) Module-default tiny shapes (B=2, N=16 vertices, C=32 channels):
    #    lane-sparse -> XLA fast path (per perf guidance).
    B, N, C = 2, 16, 32
    x = jax.random.normal(k1, (B, N, C), dtype=jnp.float32)
    his = jax.random.normal(k2, (B, N, N), dtype=jnp.float32)
    s, h = spatial_attention(x)
    jax.block_until_ready(s)
    assert h is None
    assert jnp.allclose(s, _ref(x), atol=1e-5, rtol=1e-5)
    s2, h2 = spatial_attention(x, his)
    jax.block_until_ready((s2, h2))
    assert jnp.allclose(s2, _ref(x, his), atol=1e-5, rtol=1e-5)
    assert jnp.allclose(h2, s2)

    # 2) Lane-dense small-N Pallas path (whole score per batch, batch packing).
    B1, N1, C1 = 4, 128, 32
    x1 = jax.random.normal(k3, (B1, N1, C1), dtype=jnp.float32)
    his1 = jax.random.normal(k4, (B1, N1, N1), dtype=jnp.float32)
    s3, _ = spatial_attention(x1)
    s4, h4 = spatial_attention(x1, his1)
    jax.block_until_ready((s3, s4, h4))
    assert jnp.allclose(s3, _ref(x1), atol=1e-4, rtol=1e-4)
    assert jnp.allclose(s4, _ref(x1, his1), atol=1e-4, rtol=1e-4)
    assert jnp.allclose(h4, s4)

    # 3) Tiled large-N Pallas path (budget override forces tiling at a small,
    #    fast test size; exercises partial edge tiles on both axes).
    B2, N2, C2 = 2, 320, 32
    x2 = jax.random.normal(k5, (B2, N2, C2), dtype=jnp.float32)
    his2 = jax.random.normal(k6, (B2, N2, N2), dtype=jnp.float32)
    s5, _ = spatial_attention(x2, step_budget_bytes=512 * 1024)
    s6, h6 = spatial_attention(x2, his2, step_budget_bytes=512 * 1024)
    jax.block_until_ready((s5, s6, h6))
    assert jnp.allclose(s5, _ref(x2), atol=1e-4, rtol=1e-4)
    assert jnp.allclose(s6, _ref(x2, his2), atol=1e-4, rtol=1e-4)
    assert jnp.allclose(h6, s6)

    print("KERNEL_OK")
</pallas_src>

<mosaic_0001>
module attributes {stable_mosaic.version = 11 : i64} {
  func.func @_batched_kernel(%arg0: i32, %arg1: memref<4x128x32xf32, #tpu.memory_space<vmem>>, %arg2: memref<4x128x128xf32, #tpu.memory_space<vmem>>) attributes {dimension_semantics = [#tpu.dimension_semantics<parallel>], iteration_bounds = array<i64: 1>, scalar_prefetch = 0 : i64, scratch_operands = 0 : i64, tpu.core_type = #tpu.core_type<tc>, window_params = [{transform_indices = @transform_0, window_bounds = array<i64: 4, 128, 32>}, {transform_indices = @transform_1, window_bounds = array<i64: 4, 128, 128>}]} {
    %c0 = arith.constant 0 : index
    %c0_0 = arith.constant 0 : index
    %c0_1 = arith.constant 0 : index
    %0 = vector.load %arg1[%c0, %c0_0, %c0_1] : memref<4x128x32xf32, #tpu.memory_space<vmem>>, vector<4x128x32xf32>
    "tpu.trace_start"() <{level = 10 : i32, message = "bnc,bmc->bnm"}> : () -> ()
    %cst = arith.constant dense<0.000000e+00> : vector<4x128x128xf32>
    %1 = tpu.matmul %0, %0, %cst {dimension_numbers = #tpu.dot_dimension_numbers<[2], [2], [1], [1], [0, 0, 0, 1, 1, 1], [0], [0]>} : vector<4x128x32xf32>, vector<4x128x32xf32>, vector<4x128x128xf32> -> vector<4x128x128xf32>
    "tpu.trace_stop"() : () -> ()
    %cst_2 = arith.constant 0.176776692 : f32
    %2 = vector.broadcast %cst_2 : f32 to vector<4x128x128xf32>
    %3 = arith.mulf %1, %2 : vector<4x128x128xf32>
    %c0_3 = arith.constant 0 : index
    %c0_4 = arith.constant 0 : index
    %c0_5 = arith.constant 0 : index
    %4 = vector.load %arg2[%c0_3, %c0_4, %c0_5] : memref<4x128x128xf32, #tpu.memory_space<vmem>>, vector<4x128x128xf32>
    tpu.vector_store %arg2[%c0_3, %c0_4, %c0_5], %3 {strides = array<i32>} : memref<4x128x128xf32, #tpu.memory_space<vmem>>, vector<4x128x128xf32>,
    return
  }
  func.func @transform_0(%arg0: i32) -> (i32, i32, i32) {
    %c0_i32 = arith.constant 0 : i32
    %c0_i32_0 = arith.constant 0 : i32
    %c0_i32_1 = arith.constant 0 : i32
    return %arg0, %c0_i32, %c0_i32_0 : i32, i32, i32
  }
  func.func @transform_1(%arg0: i32) -> (i32, i32, i32) {
    %c0_i32 = arith.constant 0 : i32
    %c0_i32_0 = arith.constant 0 : i32
    %c0_i32_1 = arith.constant 0 : i32
    return %arg0, %c0_i32, %c0_i32_0 : i32, i32, i32
  }
}

</mosaic_0001>

<llo_original>
// kernel: tpu_custom_call.1
$region0: #{tpu_custom_call.1}
  #allocation0 [shape = 'u32[]', space=smem, size = 0x4, offset = 0x4, fixed_abs, tag = 'smem constant byte address 0x4 - core index']
  #allocation1 [shape = 'u32[144,128]{1,0:T(1,128)}', space=vmem, size = 0x12000, scoped, tag = 'internal scratch']
  %s0 = inlined_call_operand.vmem [shape: f32[4,128,32], index: 0, kind: input, shape index: {}]
  %s1 = inlined_call_operand.hbm [shape: f32[4,128,128], index: 1, kind: output, shape index: {}]
  %s2 = sld [smem:[#allocation0]]
  $region14: #{tpu_custom_call.1} parent=0
    _
  %s4 = ssub.s32 1, %s2
  %s5 = scalar_select 0, %s4, %s2
  $region1: #{tpu_custom_call.1} parent=0
    #allocation2 [shape = 'u8[262144]{0}', space=vmem, size = 0x40000, scoped, tag = 'output window, operand 0, single buffered']
    #allocation3 [shape = 's32[1]{0}', space=sflag, size = 0x4, scoped, tag = 'scoped memory for tpu_custom_call.1']
    %6 = vsyncpa [#allocation3], 0
    // Predicated region
    $region2: #{tpu_custom_call.1} parent=1 // pred_check
      _
    $region3: #{tpu_custom_call.1} parent=1 // pred_check_branch
      %8 = sbr.rel (0) target = $region5
    $region4: #{tpu_custom_call.1} parent=1 // pred_region
      _
    $region5: #{tpu_custom_call.1} parent=1 // pred_fallthru
      _
    %v9 = vld [vmem:[%s0] sm:$0xff]
    %v10 = vld [vmem:[%s0 + $0x8] sm:$0xff]
    %v11 = vld [vmem:[%s0 + $0x10] sm:$0xff]
    %v12 = vld [vmem:[%s0 + $0x18] sm:$0xff]
    %v13 = vld [vmem:[%s0 + $0x20] sm:$0xff]
    %v14 = vld [vmem:[%s0 + $0x28] sm:$0xff]
    %v15 = vld [vmem:[%s0 + $0x30] sm:$0xff]
    %v16 = vld [vmem:[%s0 + $0x38] sm:$0xff]
    %v17 = vld [vmem:[%s0 + $0x40] sm:$0xff]
    %v18 = vld [vmem:[%s0 + $0x48] sm:$0xff]
    %v19 = vld [vmem:[%s0 + $0x50] sm:$0xff]
    %v20 = vld [vmem:[%s0 + $0x58] sm:$0xff]
    %v21 = vld [vmem:[%s0 + $0x60] sm:$0xff]
    %v22 = vld [vmem:[%s0 + $0x68] sm:$0xff]
    %v23 = vld [vmem:[%s0 + $0x70] sm:$0xff]
    %v24 = vld [vmem:[%s0 + $0x78] sm:$0xff]
    %v25 = vld [vmem:[%s0 + $0x80] sm:$0xff]
    %v26 = vld [vmem:[%s0 + $0x88] sm:$0xff]
    %v27 = vld [vmem:[%s0 + $0x90] sm:$0xff]
    %v28 = vld [vmem:[%s0 + $0x98] sm:$0xff]
    %v29 = vld [vmem:[%s0 + $0xa0] sm:$0xff]
    %v30 = vld [vmem:[%s0 + $0xa8] sm:$0xff]
    %v31 = vld [vmem:[%s0 + $0xb0] sm:$0xff]
    %v32 = vld [vmem:[%s0 + $0xb8] sm:$0xff]
    %v33 = vld [vmem:[%s0 + $0xc0] sm:$0xff]
    %v34 = vld [vmem:[%s0 + $0xc8] sm:$0xff]
    %v35 = vld [vmem:[%s0 + $0xd0] sm:$0xff]
    %v36 = vld [vmem:[%s0 + $0xd8] sm:$0xff]
    %v37 = vld [vmem:[%s0 + $0xe0] sm:$0xff]
    %v38 = vld [vmem:[%s0 + $0xe8] sm:$0xff]
    %v39 = vld [vmem:[%s0 + $0xf0] sm:$0xff]
    %v40 = vld [vmem:[%s0 + $0xf8] sm:$0xff]
    %v41 = vld [vmem:[%s0 + $0x100] sm:$0xff]
    %v42 = vld [vmem:[%s0 + $0x108] sm:$0xff]
    %v43 = vld [vmem:[%s0 + $0x110] sm:$0xff]
    %v44 = vld [vmem:[%s0 + $0x118] sm:$0xff]
    %v45 = vld [vmem:[%s0 + $0x120] sm:$0xff]
    %v46 = vld [vmem:[%s0 + $0x128] sm:$0xff]
    %v47 = vld [vmem:[%s0 + $0x130] sm:$0xff]
    %v48 = vld [vmem:[%s0 + $0x138] sm:$0xff]
    %v49 = vld [vmem:[%s0 + $0x140] sm:$0xff]
    %v50 = vld [vmem:[%s0 + $0x148] sm:$0xff]
    %v51 = vld [vmem:[%s0 + $0x150] sm:$0xff]
    %v52 = vld [vmem:[%s0 + $0x158] sm:$0xff]
    %v53 = vld [vmem:[%s0 + $0x160] sm:$0xff]
    %v54 = vld [vmem:[%s0 + $0x168] sm:$0xff]
    %v55 = vld [vmem:[%s0 + $0x170] sm:$0xff]
    %v56 = vld [vmem:[%s0 + $0x178] sm:$0xff]
    %v57 = vld [vmem:[%s0 + $0x180] sm:$0xff]
    %v58 = vld [vmem:[%s0 + $0x188] sm:$0xff]
    %v59 = vld [vmem:[%s0 + $0x190] sm:$0xff]
    %v60 = vld [vmem:[%s0 + $0x198] sm:$0xff]
    %v61 = vld [vmem:[%s0 + $0x1a0] sm:$0xff]
    %v62 = vld [vmem:[%s0 + $0x1a8] sm:$0xff]
    %v63 = vld [vmem:[%s0 + $0x1b0] sm:$0xff]
    %v64 = vld [vmem:[%s0 + $0x1b8] sm:$0xff]
    %v65 = vld [vmem:[%s0 + $0x1c0] sm:$0xff]
    %v66 = vld [vmem:[%s0 + $0x1c8] sm:$0xff]
    %v67 = vld [vmem:[%s0 + $0x1d0] sm:$0xff]
    %v68 = vld [vmem:[%s0 + $0x1d8] sm:$0xff]
    %v69 = vld [vmem:[%s0 + $0x1e0] sm:$0xff]
    %v70 = vld [vmem:[%s0 + $0x1e8] sm:$0xff]
    %v71 = vld [vmem:[%s0 + $0x1f0] sm:$0xff]
    %v72 = vld [vmem:[%s0 + $0x1f8] sm:$0xff]
    %vm73 = vcmask 261120
    %v75 = vsel %vm73, %v9, 0
    %v78 = vsel %vm73, %v10, 0
    %v81 = vsel %vm73, %v11, 0
    %v84 = vsel %vm73, %v12, 0
    %v87 = vsel %vm73, %v13, 0
    %v90 = vsel %vm73, %v14, 0
    %v93 = vsel %vm73, %v15, 0
    %v96 = vsel %vm73, %v16, 0
    %v99 = vsel %vm73, %v17, 0
    %v102 = vsel %vm73, %v18, 0
    %v105 = vsel %vm73, %v19, 0
    %v108 = vsel %vm73, %v20, 0
    %v111 = vsel %vm73, %v21, 0
    %v114 = vsel %vm73, %v22, 0
    %v117 = vsel %vm73, %v23, 0
    %v120 = vsel %vm73, %v24, 0
    %122 = vmatprep.subr.mxu0 0.0
    %123 = vmatpush1.xpose.msra.mxu0 %v120
    %124 = vmatprep.subr.mxu0 0.0
    %125 = vmatpush1.xpose.msra.mxu0 %v117
    %126 = vmatprep.subr.mxu0 0.0
    %127 = vmatpush1.xpose.msra.mxu0 %v114
    %128 = vmatprep.subr.mxu0 0.0
    %129 = vmatpush1.xpose.msra.mxu0 %v111
    %130 = vmatprep.subr.mxu0 0.0
    %131 = vmatpush1.xpose.msra.mxu0 %v108
    %132 = vmatprep.subr.mxu0 0.0
    %133 = vmatpush1.xpose.msra.mxu0 %v105
    %134 = vmatprep.subr.mxu0 0.0
    %135 = vmatpush1.xpose.msra.mxu0 %v102
    %136 = vmatprep.subr.mxu0 0.0
    %137 = vmatpush1.xpose.msra.mxu0 %v99
    %138 = vmatprep.subr.mxu0 0.0
    %139 = vmatpush1.xpose.msra.mxu0 %v96
    %140 = vmatprep.subr.mxu0 0.0
    %141 = vmatpush1.xpose.msra.mxu0 %v93
    %142 = vmatprep.subr.mxu0 0.0
    %143 = vmatpush1.xpose.msra.mxu0 %v90
    %144 = vmatprep.subr.mxu0 0.0
    %145 = vmatpush1.xpose.msra.mxu0 %v87
    %146 = vmatprep.subr.mxu0 0.0
    %147 = vmatpush1.xpose.msra.mxu0 %v84
    %148 = vmatprep.subr.mxu0 0.0
    %149 = vmatpush1.xpose.msra.mxu0 %v81
    %150 = vmatprep.subr.mxu0 0.0
    %151 = vmatpush1.xpose.msra.mxu0 %v78
    %152 = vmatprep.subr.mxu0 0.0
    %153 = vmatpush1.xpose.msra.mxu0 %v75
    %154 = vmatprep.subr.mxu0 0.0
    %155 = vmatpush2.xpose.msra.mxu0 0.0
    %156 = vmatprep.subr.mxu0 0.0
    %157 = vmatpush2.xpose.msra.mxu0 0.0
    %158 = vmatprep.subr.mxu0 0.0
    %159 = vmatpush2.xpose.msra.mxu0 0.0
    %160 = vmatprep.subr.mxu0 0.0
    %161 = vmatpush2.xpose.msra.mxu0 0.0
    %162 = vmatprep.subr.mxu0 0.0
    %163 = vmatpush2.xpose.msra.mxu0 0.0
    %164 = vmatprep.subr.mxu0 0.0
    %165 = vmatpush2.xpose.msra.mxu0 0.0
    %166 = vmatprep.subr.mxu0 0.0
    %167 = vmatpush2.xpose.msra.mxu0 0.0
    %168 = vmatprep.subr.mxu0 0.0
    %169 = vmatpush2.xpose.msra.mxu0 0.0
    %170 = vmatprep.subr.mxu0 0.0
    %171 = vmatpush2.xpose.msra.mxu0 0.0
    %172 = vmatprep.subr.mxu0 0.0
    %173 = vmatpush2.xpose.msra.mxu0 0.0
    %174 = vmatprep.subr.mxu0 0.0
    %175 = vmatpush2.xpose.msra.mxu0 0.0
    %176 = vmatprep.subr.mxu0 0.0
    %177 = vmatpush2.xpose.msra.mxu0 0.0
    %178 = vmatprep.subr.mxu0 0.0
    %179 = vmatpush2.xpose.msra.mxu0 0.0
    %180 = vmatprep.subr.mxu0 0.0
    %181 = vmatpush2.xpose.msra.mxu0 0.0
    %182 = vmatprep.subr.mxu0 0.0
    %183 = vmatpush2.xpose.msra.mxu0 0.0
    %184 = vmatprep.subr.mxu0 0.0
    %185 = vmatpush2.xpose.msra.mxu0 0.0
    %186 = vmatprep.mubr.f32.mxu0 0.0
    %187 = vmatmul.mubr.f32.gmra.mxu0 %v75
    %v188 = vpop.f32.mrf.mxu0
    %v189 = vadd.f32 0.0, %v188
    %v190 = vpop.f32.mrf.mxu0
    %191 = vmatprep.mubr.f32.mxu0 0.0
    %192 = vmatmul.mubr.f32.gmra.mxu0 %v78
    %v193 = vpop.f32.mrf.mxu0
    %v194 = vadd.f32 0.0, %v193
    %v195 = vpop.f32.mrf.mxu0
    %196 = vmatprep.mubr.f32.mxu0 0.0
    %197 = vmatmul.mubr.f32.gmra.mxu0 %v81
    %v198 = vpop.f32.mrf.mxu0
    %v199 = vadd.f32 0.0, %v198
    %v200 = vpop.f32.mrf.mxu0
    %201 = vmatprep.mubr.f32.mxu0 0.0
    %202 = vmatmul.mubr.f32.gmra.mxu0 %v84
    %v203 = vpop.f32.mrf.mxu0
    %v204 = vadd.f32 0.0, %v203
    %v205 = vpop.f32.mrf.mxu0
    %206 = vmatprep.mubr.f32.mxu0 0.0
    %207 = vmatmul.mubr.f32.gmra.mxu0 %v87
    %v208 = vpop.f32.mrf.mxu0
    %v209 = vadd.f32 0.0, %v208
    %v210 = vpop.f32.mrf.mxu0
    %211 = vmatprep.mubr.f32.mxu0 0.0
    %212 = vmatmul.mubr.f32.gmra.mxu0 %v90
    %v213 = vpop.f32.mrf.mxu0
    %v214 = vadd.f32 0.0, %v213
    %v215 = vpop.f32.mrf.mxu0
    %216 = vmatprep.mubr.f32.mxu0 0.0
    %217 = vmatmul.mubr.f32.gmra.mxu0 %v93
    %v218 = vpop.f32.mrf.mxu0
    %v219 = vadd.f32 0.0, %v218
    %v220 = vpop.f32.mrf.mxu0
    %221 = vmatprep.mubr.f32.mxu0 0.0
    %222 = vmatmul.mubr.f32.gmra.mxu0 %v96
    %v223 = vpop.f32.mrf.mxu0
    %v224 = vadd.f32 0.0, %v223
    %v225 = vpop.f32.mrf.mxu0
    %226 = vmatprep.mubr.f32.mxu0 0.0
    %227 = vmatmul.mubr.f32.gmra.mxu0 %v99
    %v228 = vpop.f32.mrf.mxu0
    %v229 = vadd.f32 0.0, %v228
    %v230 = vpop.f32.mrf.mxu0
    %231 = vmatprep.mubr.f32.mxu0 0.0
    %232 = vmatmul.mubr.f32.gmra.mxu0 %v102
    %v233 = vpop.f32.mrf.mxu0
    %v234 = vadd.f32 0.0, %v233
    %v235 = vpop.f32.mrf.mxu0
    %236 = vmatprep.mubr.f32.mxu0 0.0
    %237 = vmatmul.mubr.f32.gmra.mxu0 %v105
    %v238 = vpop.f32.mrf.mxu0
    %v239 = vadd.f32 0.0, %v238
    %v240 = vpop.f32.mrf.mxu0
    %241 = vmatprep.mubr.f32.mxu0 0.0
    %242 = vmatmul.mubr.f32.gmra.mxu0 %v108
    %v243 = vpop.f32.mrf.mxu0
    %v244 = vadd.f32 0.0, %v243
    %v245 = vpop.f32.mrf.mxu0
    %246 = vmatprep.mubr.f32.mxu0 0.0
    %247 = vmatmul.mubr.f32.gmra.mxu0 %v111
    %v248 = vpop.f32.mrf.mxu0
    %v249 = vadd.f32 0.0, %v248
    %v250 = vpop.f32.mrf.mxu0
    %251 = vmatprep.mubr.f32.mxu0 0.0
    %252 = vmatmul.mubr.f32.gmra.mxu0 %v114
    %v253 = vpop.f32.mrf.mxu0
    %v254 = vadd.f32 0.0, %v253
    %v255 = vpop.f32.mrf.mxu0
    %256 = vmatprep.mubr.f32.mxu0 0.0
    %257 = vmatmul.mubr.f32.gmra.mxu0 %v117
    %v258 = vpop.f32.mrf.mxu0
    %v259 = vadd.f32 0.0, %v258
    %v260 = vpop.f32.mrf.mxu0
    %261 = vmatprep.mubr.f32.mxu0 0.0
    %262 = vmatmul.mubr.f32.gmra.mxu0 %v120
    %v263 = vpop.f32.mrf.mxu0
    %v264 = vadd.f32 0.0, %v263
    %v265 = vpop.f32.mrf.mxu0
    %266 = vdwg.mxu0
    %v268 = vsel %vm73, %v25, 0
    %v271 = vsel %vm73, %v26, 0
    %v274 = vsel %vm73, %v27, 0
    %v277 = vsel %vm73, %v28, 0
    %v280 = vsel %vm73, %v29, 0
    %v283 = vsel %vm73, %v30, 0
    %v286 = vsel %vm73, %v31, 0
    %v289 = vsel %vm73, %v32, 0
    %v292 = vsel %vm73, %v33, 0
    %v295 = vsel %vm73, %v34, 0
    %v298 = vsel %vm73, %v35, 0
    %v301 = vsel %vm73, %v36, 0
    %v304 = vsel %vm73, %v37, 0
    %v307 = vsel %vm73, %v38, 0
    %v310 = vsel %vm73, %v39, 0
    %v313 = vsel %vm73, %v40, 0
    %315 = vmatprep.subr.mxu0 0.0
    %316 = vmatpush1.xpose.msra.mxu0 %v313
    %317 = vmatprep.subr.mxu0 0.0
    %318 = vmatpush1.xpose.msra.mxu0 %v310
    %319 = vmatprep.subr.mxu0 0.0
    %320 = vmatpush1.xpose.msra.mxu0 %v307
    %321 = vmatprep.subr.mxu0 0.0
    %322 = vmatpush1.xpose.msra.mxu0 %v304
    %323 = vmatprep.subr.mxu0 0.0
    %324 = vmatpush1.xpose.msra.mxu0 %v301
    %325 = vmatprep.subr.mxu0 0.0
    %326 = vmatpush1.xpose.msra.mxu0 %v298
    %327 = vmatprep.subr.mxu0 0.0
    %328 = vmatpush1.xpose.msra.mxu0 %v295
    %329 = vmatprep.subr.mxu0 0.0
    %330 = vmatpush1.xpose.msra.mxu0 %v292
    %331 = vmatprep.subr.mxu0 0.0
    %332 = vmatpush1.xpose.msra.mxu0 %v289
    %333 = vmatprep.subr.mxu0 0.0
    %334 = vmatpush1.xpose.msra.mxu0 %v286
    %335 = vmatprep.subr.mxu0 0.0
    %336 = vmatpush1.xpose.msra.mxu0 %v283
    %337 = vmatprep.subr.mxu0 0.0
    %338 = vmatpush1.xpose.msra.mxu0 %v280
    %339 = vmatprep.subr.mxu0 0.0
    %340 = vmatpush1.xpose.msra.mxu0 %v277
    %341 = vmatprep.subr.mxu0 0.0
    %342 = vmatpush1.xpose.msra.mxu0 %v274
    %343 = vmatprep.subr.mxu0 0.0
    %344 = vmatpush1.xpose.msra.mxu0 %v271
    %345 = vmatprep.subr.mxu0 0.0
    %346 = vmatpush1.xpose.msra.mxu0 %v268
    %347 = vmatprep.subr.mxu0 0.0
    %348 = vmatpush2.xpose.msra.mxu0 0.0
    %349 = vmatprep.subr.mxu0 0.0
    %350 = vmatpush2.xpose.msra.mxu0 0.0
    %351 = vmatprep.subr.mxu0 0.0
    %352 = vmatpush2.xpose.msra.mxu0 0.0
    %353 = vmatprep.subr.mxu0 0.0
    %354 = vmatpush2.xpose.msra.mxu0 0.0
    %355 = vmatprep.subr.mxu0 0.0
    %356 = vmatpush2.xpose.msra.mxu0 0.0
    %357 = vmatprep.subr.mxu0 0.0
    %358 = vmatpush2.xpose.msra.mxu0 0.0
    %359 = vmatprep.subr.mxu0 0.0
    %360 = vmatpush2.xpose.msra.mxu0 0.0
    %361 = vmatprep.subr.mxu0 0.0
    %362 = vmatpush2.xpose.msra.mxu0 0.0
    %363 = vmatprep.subr.mxu0 0.0
    %364 = vmatpush2.xpose.msra.mxu0 0.0
    %365 = vmatprep.subr.mxu0 0.0
    %366 = vmatpush2.xpose.msra.mxu0 0.0
    %367 = vmatprep.subr.mxu0 0.0
    %368 = vmatpush2.xpose.msra.mxu0 0.0
    %369 = vmatprep.subr.mxu0 0.0
    %370 = vmatpush2.xpose.msra.mxu0 0.0
    %371 = vmatprep.subr.mxu0 0.0
    %372 = vmatpush2.xpose.msra.mxu0 0.0
    %373 = vmatprep.subr.mxu0 0.0
    %374 = vmatpush2.xpose.msra.mxu0 0.0
    %375 = vmatprep.subr.mxu0 0.0
    %376 = vmatpush2.xpose.msra.mxu0 0.0
    %377 = vmatprep.subr.mxu0 0.0
    %378 = vmatpush2.xpose.msra.mxu0 0.0
    %379 = vmatprep.mubr.f32.mxu0 0.0
    %380 = vmatmul.mubr.f32.gmra.mxu0 %v268
    %v381 = vpop.f32.mrf.mxu0
    %v382 = vadd.f32 0.0, %v381
    %v383 = vpop.f32.mrf.mxu0
    %384 = vmatprep.mubr.f32.mxu0 0.0
    %385 = vmatmul.mubr.f32.gmra.mxu0 %v271
    %v386 = vpop.f32.mrf.mxu0
    %v387 = vadd.f32 0.0, %v386
    %v388 = vpop.f32.mrf.mxu0
    %389 = vmatprep.mubr.f32.mxu0 0.0
    %390 = vmatmul.mubr.f32.gmra.mxu0 %v274
    %v391 = vpop.f32.mrf.mxu0
    %v392 = vadd.f32 0.0, %v391
    %v393 = vpop.f32.mrf.mxu0
    %394 = vmatprep.mubr.f32.mxu0 0.0
    %395 = vmatmul.mubr.f32.gmra.mxu0 %v277
    %v396 = vpop.f32.mrf.mxu0
    %v397 = vadd.f32 0.0, %v396
    %v398 = vpop.f32.mrf.mxu0
    %399 = vmatprep.mubr.f32.mxu0 0.0
    %400 = vmatmul.mubr.f32.gmra.mxu0 %v280
    %v401 = vpop.f32.mrf.mxu0
    %v402 = vadd.f32 0.0, %v401
    %v403 = vpop.f32.mrf.mxu0
    %404 = vmatprep.mubr.f32.mxu0 0.0
    %405 = vmatmul.mubr.f32.gmra.mxu0 %v283
    %v406 = vpop.f32.mrf.mxu0
    %v407 = vadd.f32 0.0, %v406
    %v408 = vpop.f32.mrf.mxu0
    %409 = vmatprep.mubr.f32.mxu0 0.0
    %410 = vmatmul.mubr.f32.gmra.mxu0 %v286
    %v411 = vpop.f32.mrf.mxu0
    %v412 = vadd.f32 0.0, %v411
    %v413 = vpop.f32.mrf.mxu0
    %414 = vmatprep.mubr.f32.mxu0 0.0
    %415 = vmatmul.mubr.f32.gmra.mxu0 %v289
    %v416 = vpop.f32.mrf.mxu0
    %v417 = vadd.f32 0.0, %v416
    %v418 = vpop.f32.mrf.mxu0
    %419 = vmatprep.mubr.f32.mxu0 0.0
    %420 = vmatmul.mubr.f32.gmra.mxu0 %v292
    %v421 = vpop.f32.mrf.mxu0
    %v422 = vadd.f32 0.0, %v421
    %v423 = vpop.f32.mrf.mxu0
    %424 = vmatprep.mubr.f32.mxu0 0.0
    %425 = vmatmul.mubr.f32.gmra.mxu0 %v295
    %v426 = vpop.f32.mrf.mxu0
    %v427 = vadd.f32 0.0, %v426
    %v428 = vpop.f32.mrf.mxu0
    %429 = vmatprep.mubr.f32.mxu0 0.0
    %430 = vmatmul.mubr.f32.gmra.mxu0 %v298
    %v431 = vpop.f32.mrf.mxu0
    %v432 = vadd.f32 0.0, %v431
    %v433 = vpop.f32.mrf.mxu0
    %434 = vmatprep.mubr.f32.mxu0 0.0
    %435 = vmatmul.mubr.f32.gmra.mxu0 %v301
    %v436 = vpop.f32.mrf.mxu0
    %v437 = vadd.f32 0.0, %v436
    %v438 = vpop.f32.mrf.mxu0
    %439 = vmatprep.mubr.f32.mxu0 0.0
    %440 = vmatmul.mubr.f32.gmra.mxu0 %v304
    %v441 = vpop.f32.mrf.mxu0
    %v442 = vadd.f32 0.0, %v441
    %v443 = vpop.f32.mrf.mxu0
    %444 = vmatprep.mubr.f32.mxu0 0.0
    %445 = vmatmul.mubr.f32.gmra.mxu0 %v307
    %v446 = vpop.f32.mrf.mxu0
    %v447 = vadd.f32 0.0, %v446
    %v448 = vpop.f32.mrf.mxu0
    %449 = vmatprep.mubr.f32.mxu0 0.0
    %450 = vmatmul.mubr.f32.gmra.mxu0 %v310
    %v451 = vpop.f32.mrf.mxu0
    %v452 = vadd.f32 0.0, %v451
    %v453 = vpop.f32.mrf.mxu0
    %454 = vmatprep.mubr.f32.mxu0 0.0
    %455 = vmatmul.mubr.f32.gmra.mxu0 %v313
    %v456 = vpop.f32.mrf.mxu0
    %v457 = vadd.f32 0.0, %v456
    %v458 = vpop.f32.mrf.mxu0
    %459 = vdwg.mxu0
    %v461 = vsel %vm73, %v41, 0
    %v464 = vsel %vm73, %v42, 0
    %v467 = vsel %vm73, %v43, 0
    %v470 = vsel %vm73, %v44, 0
    %v473 = vsel %vm73, %v45, 0
    %v476 = vsel %vm73, %v46, 0
    %v479 = vsel %vm73, %v47, 0
    %v482 = vsel %vm73, %v48, 0
    %v485 = vsel %vm73, %v49, 0
    %v488 = vsel %vm73, %v50, 0
    %v491 = vsel %vm73, %v51, 0
    %v494 = vsel %vm73, %v52, 0
    %v497 = vsel %vm73, %v53, 0
    %v500 = vsel %vm73, %v54, 0
    %v503 = vsel %vm73, %v55, 0
    %v506 = vsel %vm73, %v56, 0
    %508 = vmatprep.subr.mxu0 0.0
    %509 = vmatpush1.xpose.msra.mxu0 %v506
    %510 = vmatprep.subr.mxu0 0.0
    %511 = vmatpush1.xpose.msra.mxu0 %v503
    %512 = vmatprep.subr.mxu0 0.0
    %513 = vmatpush1.xpose.msra.mxu0 %v500
    %514 = vmatprep.subr.mxu0 0.0
    %515 = vmatpush1.xpose.msra.mxu0 %v497
    %516 = vmatprep.subr.mxu0 0.0
    %517 = vmatpush1.xpose.msra.mxu0 %v494
    %518 = vmatprep.subr.mxu0 0.0
    %519 = vmatpush1.xpose.msra.mxu0 %v491
    %520 = vmatprep.subr.mxu0 0.0
    %521 = vmatpush1.xpose.msra.mxu0 %v488
    %522 = vmatprep.subr.mxu0 0.0
    %523 = vmatpush1.xpose.msra.mxu0 %v485
    %524 = vmatprep.subr.mxu0 0.0
    %525 = vmatpush1.xpose.msra.mxu0 %v482
    %526 = vmatprep.subr.mxu0 0.0
    %527 = vmatpush1.xpose.msra.mxu0 %v479
    %528 = vmatprep.subr.mxu0 0.0
    %529 = vmatpush1.xpose.msra.mxu0 %v476
    %530 = vmatprep.subr.mxu0 0.0
    %531 = vmatpush1.xpose.msra.mxu0 %v473
    %532 = vmatprep.subr.mxu0 0.0
    %533 = vmatpush1.xpose.msra.mxu0 %v470
    %534 = vmatprep.subr.mxu0 0.0
    %535 = vmatpush1.xpose.msra.mxu0 %v467
    %536 = vmatprep.subr.mxu0 0.0
    %537 = vmatpush1.xpose.msra.mxu0 %v464
    %538 = vmatprep.subr.mxu0 0.0
    %539 = vmatpush1.xpose.msra.mxu0 %v461
    %540 = vmatprep.subr.mxu0 0.0
    %541 = vmatpush2.xpose.msra.mxu0 0.0
    %542 = vmatprep.subr.mxu0 0.0
    %543 = vmatpush2.xpose.msra.mxu0 0.0
    %544 = vmatprep.subr.mxu0 0.0
    %545 = vmatpush2.xpose.msra.mxu0 0.0
    %546 = vmatprep.subr.mxu0 0.0
    %547 = vmatpush2.xpose.msra.mxu0 0.0
    %548 = vmatprep.subr.mxu0 0.0
    %549 = vmatpush2.xpose.msra.mxu0 0.0
    %550 = vmatprep.subr.mxu0 0.0
    %551 = vmatpush2.xpose.msra.mxu0 0.0
    %552 = vmatprep.subr.mxu0 0.0
    %553 = vmatpush2.xpose.msra.mxu0 0.0
    %554 = vmatprep.subr.mxu0 0.0
    %555 = vmatpush2.xpose.msra.mxu0 0.0
    %556 = vmatprep.subr.mxu0 0.0
    %557 = vmatpush2.xpose.msra.mxu0 0.0
    %558 = vmatprep.subr.mxu0 0.0
    %559 = vmatpush2.xpose.msra.mxu0 0.0
    %560 = vmatprep.subr.mxu0 0.0
    %561 = vmatpush2.xpose.msra.mxu0 0.0
    %562 = vmatprep.subr.mxu0 0.0
    %563 = vmatpush2.xpose.msra.mxu0 0.0
    %564 = vmatprep.subr.mxu0 0.0
    %565 = vmatpush2.xpose.msra.mxu0 0.0
    %566 = vmatprep.subr.mxu0 0.0
    %567 = vmatpush2.xpose.msra.mxu0 0.0
    %568 = vmatprep.subr.mxu0 0.0
    %569 = vmatpush2.xpose.msra.mxu0 0.0
    %570 = vmatprep.subr.mxu0 0.0
    %571 = vmatpush2.xpose.msra.mxu0 0.0
    %572 = vmatprep.mubr.f32.mxu0 0.0
    %573 = vmatmul.mubr.f32.gmra.mxu0 %v461
    %v574 = vpop.f32.mrf.mxu0
    %v575 = vadd.f32 0.0, %v574
    %v576 = vpop.f32.mrf.mxu0
    %577 = vmatprep.mubr.f32.mxu0 0.0
    %578 = vmatmul.mubr.f32.gmra.mxu0 %v464
    %v579 = vpop.f32.mrf.mxu0
    %v580 = vadd.f32 0.0, %v579
    %v581 = vpop.f32.mrf.mxu0
    %582 = vmatprep.mubr.f32.mxu0 0.0
    %583 = vmatmul.mubr.f32.gmra.mxu0 %v467
    %v584 = vpop.f32.mrf.mxu0
    %v585 = vadd.f32 0.0, %v584
    %v586 = vpop.f32.mrf.mxu0
    %587 = vmatprep.mubr.f32.mxu0 0.0
    %588 = vmatmul.mubr.f32.gmra.mxu0 %v470
    %v589 = vpop.f32.mrf.mxu0
    %v590 = vadd.f32 0.0, %v589
    %v591 = vpop.f32.mrf.mxu0
    %592 = vmatprep.mubr.f32.mxu0 0.0
    %593 = vmatmul.mubr.f32.gmra.mxu0 %v473
    %v594 = vpop.f32.mrf.mxu0
    %v595 = vadd.f32 0.0, %v594
    %v596 = vpop.f32.mrf.mxu0
    %597 = vmatprep.mubr.f32.mxu0 0.0
    %598 = vmatmul.mubr.f32.gmra.mxu0 %v476
    %v599 = vpop.f32.mrf.mxu0
    %v600 = vadd.f32 0.0, %v599
    %v601 = vpop.f32.mrf.mxu0
    %602 = vmatprep.mubr.f32.mxu0 0.0
    %603 = vmatmul.mubr.f32.gmra.mxu0 %v479
    %v604 = vpop.f32.mrf.mxu0
    %v605 = vadd.f32 0.0, %v604
    %v606 = vpop.f32.mrf.mxu0
    %607 = vmatprep.mubr.f32.mxu0 0.0
    %608 = vmatmul.mubr.f32.gmra.mxu0 %v482
    %v609 = vpop.f32.mrf.mxu0
    %v610 = vadd.f32 0.0, %v609
    %v611 = vpop.f32.mrf.mxu0
    %612 = vmatprep.mubr.f32.mxu0 0.0
    %613 = vmatmul.mubr.f32.gmra.mxu0 %v485
    %v614 = vpop.f32.mrf.mxu0
    %v615 = vadd.f32 0.0, %v614
    %v616 = vpop.f32.mrf.mxu0
    %617 = vmatprep.mubr.f32.mxu0 0.0
    %618 = vmatmul.mubr.f32.gmra.mxu0 %v488
    %v619 = vpop.f32.mrf.mxu0
    %v620 = vadd.f32 0.0, %v619
    %v621 = vpop.f32.mrf.mxu0
    %622 = vmatprep.mubr.f32.mxu0 0.0
    %623 = vmatmul.mubr.f32.gmra.mxu0 %v491
    %v624 = vpop.f32.mrf.mxu0
    %v625 = vadd.f32 0.0, %v624
    %v626 = vpop.f32.mrf.mxu0
    %627 = vmatprep.mubr.f32.mxu0 0.0
    %628 = vmatmul.mubr.f32.gmra.mxu0 %v494
    %v629 = vpop.f32.mrf.mxu0
    %v630 = vadd.f32 0.0, %v629
    %v631 = vpop.f32.mrf.mxu0
    %632 = vmatprep.mubr.f32.mxu0 0.0
    %633 = vmatmul.mubr.f32.gmra.mxu0 %v497
    %v634 = vpop.f32.mrf.mxu0
    %v635 = vadd.f32 0.0, %v634
    %v636 = vpop.f32.mrf.mxu0
    %637 = vmatprep.mubr.f32.mxu0 0.0
    %638 = vmatmul.mubr.f32.gmra.mxu0 %v500
    %v639 = vpop.f32.mrf.mxu0
    %v640 = vadd.f32 0.0, %v639
    %v641 = vpop.f32.mrf.mxu0
    %642 = vmatprep.mubr.f32.mxu0 0.0
    %643 = vmatmul.mubr.f32.gmra.mxu0 %v503
    %v644 = vpop.f32.mrf.mxu0
    %v645 = vadd.f32 0.0, %v644
    %v646 = vpop.f32.mrf.mxu0
    %647 = vmatprep.mubr.f32.mxu0 0.0
    %648 = vmatmul.mubr.f32.gmra.mxu0 %v506
    %v649 = vpop.f32.mrf.mxu0
    %v650 = vadd.f32 0.0, %v649
    %v651 = vpop.f32.mrf.mxu0
    %652 = vdwg.mxu0
    %v654 = vsel %vm73, %v57, 0
    %v657 = vsel %vm73, %v58, 0
    %v660 = vsel %vm73, %v59, 0
    %v663 = vsel %vm73, %v60, 0
    %v666 = vsel %vm73, %v61, 0
    %v669 = vsel %vm73, %v62, 0
    %v672 = vsel %vm73, %v63, 0
    %v675 = vsel %vm73, %v64, 0
    %v678 = vsel %vm73, %v65, 0
    %v681 = vsel %vm73, %v66, 0
    %v684 = vsel %vm73, %v67, 0
    %v687 = vsel %vm73, %v68, 0
    %v690 = vsel %vm73, %v69, 0
    %v693 = vsel %vm73, %v70, 0
    %v696 = vsel %vm73, %v71, 0
    %v699 = vsel %vm73, %v72, 0
    %701 = vmatprep.subr.mxu0 0.0
    %702 = vmatpush1.xpose.msra.mxu0 %v699
    %703 = vmatprep.subr.mxu0 0.0
    %704 = vmatpush1.xpose.msra.mxu0 %v696
    %705 = vmatprep.subr.mxu0 0.0
    %706 = vmatpush1.xpose.msra.mxu0 %v693
    %707 = vmatprep.subr.mxu0 0.0
    %708 = vmatpush1.xpose.msra.mxu0 %v690
    %709 = vmatprep.subr.mxu0 0.0
    %710 = vmatpush1.xpose.msra.mxu0 %v687
    %711 = vmatprep.subr.mxu0 0.0
    %712 = vmatpush1.xpose.msra.mxu0 %v684
    %713 = vmatprep.subr.mxu0 0.0
    %714 = vmatpush1.xpose.msra.mxu0 %v681
    %715 = vmatprep.subr.mxu0 0.0
    %716 = vmatpush1.xpose.msra.mxu0 %v678
    %717 = vmatprep.subr.mxu0 0.0
    %718 = vmatpush1.xpose.msra.mxu0 %v675
    %719 = vmatprep.subr.mxu0 0.0
    %720 = vmatpush1.xpose.msra.mxu0 %v672
    %721 = vmatprep.subr.mxu0 0.0
    %722 = vmatpush1.xpose.msra.mxu0 %v669
    %723 = vmatprep.subr.mxu0 0.0
    %724 = vmatpush1.xpose.msra.mxu0 %v666
    %725 = vmatprep.subr.mxu0 0.0
    %726 = vmatpush1.xpose.msra.mxu0 %v663
    %727 = vmatprep.subr.mxu0 0.0
    %728 = vmatpush1.xpose.msra.mxu0 %v660
    %729 = vmatprep.subr.mxu0 0.0
    %730 = vmatpush1.xpose.msra.mxu0 %v657
    %731 = vmatprep.subr.mxu0 0.0
    %732 = vmatpush1.xpose.msra.mxu0 %v654
    %733 = vmatprep.subr.mxu0 0.0
    %734 = vmatpush2.xpose.msra.mxu0 0.0
    %735 = vmatprep.subr.mxu0 0.0
    %736 = vmatpush2.xpose.msra.mxu0 0.0
    %737 = vmatprep.subr.mxu0 0.0
    %738 = vmatpush2.xpose.msra.mxu0 0.0
    %739 = vmatprep.subr.mxu0 0.0
    %740 = vmatpush2.xpose.msra.mxu0 0.0
    %741 = vmatprep.subr.mxu0 0.0
    %742 = vmatpush2.xpose.msra.mxu0 0.0
    %743 = vmatprep.subr.mxu0 0.0
    %744 = vmatpush2.xpose.msra.mxu0 0.0
    %745 = vmatprep.subr.mxu0 0.0
    %746 = vmatpush2.xpose.msra.mxu0 0.0
    %747 = vmatprep.subr.mxu0 0.0
    %748 = vmatpush2.xpose.msra.mxu0 0.0
    %749 = vmatprep.subr.mxu0 0.0
    %750 = vmatpush2.xpose.msra.mxu0 0.0
    %751 = vmatprep.subr.mxu0 0.0
    %752 = vmatpush2.xpose.msra.mxu0 0.0
    %753 = vmatprep.subr.mxu0 0.0
    %754 = vmatpush2.xpose.msra.mxu0 0.0
    %755 = vmatprep.subr.mxu0 0.0
    %756 = vmatpush2.xpose.msra.mxu0 0.0
    %757 = vmatprep.subr.mxu0 0.0
    %758 = vmatpush2.xpose.msra.mxu0 0.0
    %759 = vmatprep.subr.mxu0 0.0
    %760 = vmatpush2.xpose.msra.mxu0 0.0
    %761 = vmatprep.subr.mxu0 0.0
    %762 = vmatpush2.xpose.msra.mxu0 0.0
    %763 = vmatprep.subr.mxu0 0.0
    %764 = vmatpush2.xpose.msra.mxu0 0.0
    %765 = vmatprep.mubr.f32.mxu0 0.0
    %766 = vmatmul.mubr.f32.gmra.mxu0 %v654
    %v767 = vpop.f32.mrf.mxu0
    %v768 = vadd.f32 0.0, %v767
    %v769 = vpop.f32.mrf.mxu0
    %770 = vmatprep.mubr.f32.mxu0 0.0
    %771 = vmatmul.mubr.f32.gmra.mxu0 %v657
    %v772 = vpop.f32.mrf.mxu0
    %v773 = vadd.f32 0.0, %v772
    %v774 = vpop.f32.mrf.mxu0
    %775 = vmatprep.mubr.f32.mxu0 0.0
    %776 = vmatmul.mubr.f32.gmra.mxu0 %v660
    %v777 = vpop.f32.mrf.mxu0
    %v778 = vadd.f32 0.0, %v777
    %v779 = vpop.f32.mrf.mxu0
    %780 = vmatprep.mubr.f32.mxu0 0.0
    %781 = vmatmul.mubr.f32.gmra.mxu0 %v663
    %v782 = vpop.f32.mrf.mxu0
    %v783 = vadd.f32 0.0, %v782
    %v784 = vpop.f32.mrf.mxu0
    %785 = vmatprep.mubr.f32.mxu0 0.0
    %786 = vmatmul.mubr.f32.gmra.mxu0 %v666
    %v787 = vpop.f32.mrf.mxu0
    %v788 = vadd.f32 0.0, %v787
    %v789 = vpop.f32.mrf.mxu0
    %790 = vmatprep.mubr.f32.mxu0 0.0
    %791 = vmatmul.mubr.f32.gmra.mxu0 %v669
    %v792 = vpop.f32.mrf.mxu0
    %v793 = vadd.f32 0.0, %v792
    %v794 = vpop.f32.mrf.mxu0
    %795 = vmatprep.mubr.f32.mxu0 0.0
    %796 = vmatmul.mubr.f32.gmra.mxu0 %v672
    %v797 = vpop.f32.mrf.mxu0
    %v798 = vadd.f32 0.0, %v797
    %v799 = vpop.f32.mrf.mxu0
    %800 = vmatprep.mubr.f32.mxu0 0.0
    %801 = vmatmul.mubr.f32.gmra.mxu0 %v675
    %v802 = vpop.f32.mrf.mxu0
    %v803 = vadd.f32 0.0, %v802
    %v804 = vpop.f32.mrf.mxu0
    %805 = vmatprep.mubr.f32.mxu0 0.0
    %806 = vmatmul.mubr.f32.gmra.mxu0 %v678
    %v807 = vpop.f32.mrf.mxu0
    %v808 = vadd.f32 0.0, %v807
    %v809 = vpop.f32.mrf.mxu0
    %810 = vmatprep.mubr.f32.mxu0 0.0
    %811 = vmatmul.mubr.f32.gmra.mxu0 %v681
    %v812 = vpop.f32.mrf.mxu0
    %v813 = vadd.f32 0.0, %v812
    %v814 = vpop.f32.mrf.mxu0
    %815 = vmatprep.mubr.f32.mxu0 0.0
    %816 = vmatmul.mubr.f32.gmra.mxu0 %v684
    %v817 = vpop.f32.mrf.mxu0
    %v818 = vadd.f32 0.0, %v817
    %v819 = vpop.f32.mrf.mxu0
    %820 = vmatprep.mubr.f32.mxu0 0.0
    %821 = vmatmul.mubr.f32.gmra.mxu0 %v687
    %v822 = vpop.f32.mrf.mxu0
    %v823 = vadd.f32 0.0, %v822
    %v824 = vpop.f32.mrf.mxu0
    %825 = vmatprep.mubr.f32.mxu0 0.0
    %826 = vmatmul.mubr.f32.gmra.mxu0 %v690
    %v827 = vpop.f32.mrf.mxu0
    %v828 = vadd.f32 0.0, %v827
    %v829 = vpop.f32.mrf.mxu0
    %830 = vmatprep.mubr.f32.mxu0 0.0
    %831 = vmatmul.mubr.f32.gmra.mxu0 %v693
    %v832 = vpop.f32.mrf.mxu0
    %v833 = vadd.f32 0.0, %v832
    %v834 = vpop.f32.mrf.mxu0
    %835 = vmatprep.mubr.f32.mxu0 0.0
    %836 = vmatmul.mubr.f32.gmra.mxu0 %v696
    %v837 = vpop.f32.mrf.mxu0
    %v838 = vadd.f32 0.0, %v837
    %v839 = vpop.f32.mrf.mxu0
    %840 = vmatprep.mubr.f32.mxu0 0.0
    %841 = vmatmul.mubr.f32.gmra.mxu0 %v699
    %v842 = vpop.f32.mrf.mxu0
    %v843 = vadd.f32 0.0, %v842
    %v844 = vpop.f32.mrf.mxu0
    %845 = vdwg.mxu0
    %v846 = vmul.f32 %v189, 0.17677669
    %v847 = vmul.f32 %v194, 0.17677669
    %v848 = vmul.f32 %v199, 0.17677669
    %v849 = vmul.f32 %v204, 0.17677669
    %v850 = vmul.f32 %v209, 0.17677669
    %v851 = vmul.f32 %v214, 0.17677669
    %v852 = vmul.f32 %v219, 0.17677669
    %v853 = vmul.f32 %v224, 0.17677669
    %v854 = vmul.f32 %v229, 0.17677669
    %v855 = vmul.f32 %v234, 0.17677669
    %v856 = vmul.f32 %v239, 0.17677669
    %v857 = vmul.f32 %v244, 0.17677669
    %v858 = vmul.f32 %v249, 0.17677669
    %v859 = vmul.f32 %v254, 0.17677669
    %v860 = vmul.f32 %v259, 0.17677669
    %v861 = vmul.f32 %v264, 0.17677669
    %v862 = vmul.f32 %v382, 0.17677669
    %v863 = vmul.f32 %v387, 0.17677669
    %v864 = vmul.f32 %v392, 0.17677669
    %v865 = vmul.f32 %v397, 0.17677669
    %v866 = vmul.f32 %v402, 0.17677669
    %v867 = vmul.f32 %v407, 0.17677669
    %v868 = vmul.f32 %v412, 0.17677669
    %v869 = vmul.f32 %v417, 0.17677669
    %v870 = vmul.f32 %v422, 0.17677669
    %v871 = vmul.f32 %v427, 0.17677669
    %v872 = vmul.f32 %v432, 0.17677669
    %v873 = vmul.f32 %v437, 0.17677669
    %v874 = vmul.f32 %v442, 0.17677669
    %v875 = vmul.f32 %v447, 0.17677669
    %v876 = vmul.f32 %v452, 0.17677669
    %v877 = vmul.f32 %v457, 0.17677669
    %v878 = vmul.f32 %v575, 0.17677669
    %v879 = vmul.f32 %v580, 0.17677669
    %v880 = vmul.f32 %v585, 0.17677669
    %v881 = vmul.f32 %v590, 0.17677669
    %v882 = vmul.f32 %v595, 0.17677669
    %v883 = vmul.f32 %v600, 0.17677669
    %v884 = vmul.f32 %v605, 0.17677669
    %v885 = vmul.f32 %v610, 0.17677669
    %v886 = vmul.f32 %v615, 0.17677669
    %v887 = vmul.f32 %v620, 0.17677669
    %v888 = vmul.f32 %v625, 0.17677669
    %v889 = vmul.f32 %v630, 0.17677669
    %v890 = vmul.f32 %v635, 0.17677669
    %v891 = vmul.f32 %v640, 0.17677669
    %v892 = vmul.f32 %v645, 0.17677669
    %v893 = vmul.f32 %v650, 0.17677669
    %v894 = vmul.f32 %v768, 0.17677669
    %v895 = vmul.f32 %v773, 0.17677669
    %v896 = vmul.f32 %v778, 0.17677669
    %v897 = vmul.f32 %v783, 0.17677669
    %v898 = vmul.f32 %v788, 0.17677669
    %v899 = vmul.f32 %v793, 0.17677669
    %v900 = vmul.f32 %v798, 0.17677669
    %v901 = vmul.f32 %v803, 0.17677669
    %v902 = vmul.f32 %v808, 0.17677669
    %v903 = vmul.f32 %v813, 0.17677669
    %v904 = vmul.f32 %v818, 0.17677669
    %v905 = vmul.f32 %v823, 0.17677669
    %v906 = vmul.f32 %v828, 0.17677669
    %v907 = vmul.f32 %v833, 0.17677669
    %v908 = vmul.f32 %v838, 0.17677669
    %v909 = vmul.f32 %v843, 0.17677669
    %910 = vst [vmem:[#allocation2] sm:$0xff] %v846
    %911 = vst [vmem:[#allocation2 + $0x8] sm:$0xff] %v847
    %912 = vst [vmem:[#allocation2 + $0x10] sm:$0xff] %v848
    %913 = vst [vmem:[#allocation2 + $0x18] sm:$0xff] %v849
    %914 = vst [vmem:[#allocation2 + $0x20] sm:$0xff] %v850
    %915 = vst [vmem:[#allocation2 + $0x28] sm:$0xff] %v851
    %916 = vst [vmem:[#allocation2 + $0x30] sm:$0xff] %v852
    %917 = vst [vmem:[#allocation2 + $0x38] sm:$0xff] %v853
    %918 = vst [vmem:[#allocation2 + $0x40] sm:$0xff] %v854
    %919 = vst [vmem:[#allocation2 + $0x48] sm:$0xff] %v855
    %920 = vst [vmem:[#allocation2 + $0x50] sm:$0xff] %v856
    %921 = vst [vmem:[#allocation2 + $0x58] sm:$0xff] %v857
    %922 = vst [vmem:[#allocation2 + $0x60] sm:$0xff] %v858
    %923 = vst [vmem:[#allocation2 + $0x68] sm:$0xff] %v859
    %924 = vst [vmem:[#allocation2 + $0x70] sm:$0xff] %v860
    %925 = vst [vmem:[#allocation2 + $0x78] sm:$0xff] %v861
    %926 = vst [vmem:[#allocation2 + $0x80] sm:$0xff] %v862
    %927 = vst [vmem:[#allocation2 + $0x88] sm:$0xff] %v863
    %928 = vst [vmem:[#allocation2 + $0x90] sm:$0xff] %v864
    %929 = vst [vmem:[#allocation2 + $0x98] sm:$0xff] %v865
    %930 = vst [vmem:[#allocation2 + $0xa0] sm:$0xff] %v866
    %931 = vst [vmem:[#allocation2 + $0xa8] sm:$0xff] %v867
    %932 = vst [vmem:[#allocation2 + $0xb0] sm:$0xff] %v868
    %933 = vst [vmem:[#allocation2 + $0xb8] sm:$0xff] %v869
    %934 = vst [vmem:[#allocation2 + $0xc0] sm:$0xff] %v870
    %935 = vst [vmem:[#allocation2 + $0xc8] sm:$0xff] %v871
    %936 = vst [vmem:[#allocation2 + $0xd0] sm:$0xff] %v872
    %937 = vst [vmem:[#allocation2 + $0xd8] sm:$0xff] %v873
    %938 = vst [vmem:[#allocation2 + $0xe0] sm:$0xff] %v874
    %939 = vst [vmem:[#allocation2 + $0xe8] sm:$0xff] %v875
    %940 = vst [vmem:[#allocation2 + $0xf0] sm:$0xff] %v876
    %941 = vst [vmem:[#allocation2 + $0xf8] sm:$0xff] %v877
    %942 = vst [vmem:[#allocation2 + $0x100] sm:$0xff] %v878
    %943 = vst [vmem:[#allocation2 + $0x108] sm:$0xff] %v879
    %944 = vst [vmem:[#allocation2 + $0x110] sm:$0xff] %v880
    %945 = vst [vmem:[#allocation2 + $0x118] sm:$0xff] %v881
    %946 = vst [vmem:[#allocation2 + $0x120] sm:$0xff] %v882
    %947 = vst [vmem:[#allocation2 + $0x128] sm:$0xff] %v883
    %948 = vst [vmem:[#allocation2 + $0x130] sm:$0xff] %v884
    %949 = vst [vmem:[#allocation2 + $0x138] sm:$0xff] %v885
    %950 = vst [vmem:[#allocation2 + $0x140] sm:$0xff] %v886
    %951 = vst [vmem:[#allocation2 + $0x148] sm:$0xff] %v887
    %952 = vst [vmem:[#allocation2 + $0x150] sm:$0xff] %v888
    %953 = vst [vmem:[#allocation2 + $0x158] sm:$0xff] %v889
    %954 = vst [vmem:[#allocation2 + $0x160] sm:$0xff] %v890
    %955 = vst [vmem:[#allocation2 + $0x168] sm:$0xff] %v891
    %956 = vst [vmem:[#allocation2 + $0x170] sm:$0xff] %v892
    %957 = vst [vmem:[#allocation2 + $0x178] sm:$0xff] %v893
    %958 = vst [vmem:[#allocation2 + $0x180] sm:$0xff] %v894
    %959 = vst [vmem:[#allocation2 + $0x188] sm:$0xff] %v895
    %960 = vst [vmem:[#allocation2 + $0x190] sm:$0xff] %v896
    %961 = vst [vmem:[#allocation2 + $0x198] sm:$0xff] %v897
    %962 = vst [vmem:[#allocation2 + $0x1a0] sm:$0xff] %v898
    %963 = vst [vmem:[#allocation2 + $0x1a8] sm:$0xff] %v899
    %964 = vst [vmem:[#allocation2 + $0x1b0] sm:$0xff] %v900
    %965 = vst [vmem:[#allocation2 + $0x1b8] sm:$0xff] %v901
    %966 = vst [vmem:[#allocation2 + $0x1c0] sm:$0xff] %v902
    %967 = vst [vmem:[#allocation2 + $0x1c8] sm:$0xff] %v903
    %968 = vst [vmem:[#allocation2 + $0x1d0] sm:$0xff] %v904
    %969 = vst [vmem:[#allocation2 + $0x1d8] sm:$0xff] %v905
    %970 = vst [vmem:[#allocation2 + $0x1e0] sm:$0xff] %v906
    %971 = vst [vmem:[#allocation2 + $0x1e8] sm:$0xff] %v907
    %972 = vst [vmem:[#allocation2 + $0x1f0] sm:$0xff] %v908
    %973 = vst [vmem:[#allocation2 + $0x1f8] sm:$0xff] %v909
    // Predicated region
    $region6: #{tpu_custom_call.1} parent=1 // pred_check
      _
    $region7: #{tpu_custom_call.1} parent=1 // pred_check_branch
      %975 = sbr.rel (0) target = $region9
    $region8: #{tpu_custom_call.1} parent=1 // pred_region
      %s977 = ssub.s32 8192, 8192
      %978 = vsyncadd [#allocation3], %s977
      %s979 = sshll.u32 [#allocation2], 4
      %s980 = int_to_ptr.vmem [resolvable:$true] %s979
      %985 = dma.vmem_to_hbm [thread:$0]  %s980, 8192, %s1, [#allocation3], 128, 128, 8
    $region9: #{tpu_custom_call.1} parent=1 // pred_fallthru
      _
    // Predicated region
    $region10: #{tpu_custom_call.1} parent=1 // pred_check
      _
    $region11: #{tpu_custom_call.1} parent=1 // pred_check_branch
      %987 = sbr.rel (0) target = $region13
    $region12: #{tpu_custom_call.1} parent=1 // pred_region
      %988 = dma.done [#allocation3], 8192
    $region13: #{tpu_custom_call.1} parent=1 // pred_fallthru
      _
    %989 = vsyncpa [#allocation3], 1

</llo_original>
